<compile_context>
chip_gen: v7x
topology: tpu7x:2x2x1
jax: 0.10.0
libtpu: 0.0.40
codegen_flags: <defaults>
</compile_context>

<pallas_src>
import functools

import jax
import jax.numpy as jnp
import numpy as np
from jax.experimental import pallas as pl
from jax.experimental.pallas import tpu as pltpu


def _make_tap_masks(H, W):
    """Per-tap float32 validity masks (zero-padding borders), shape (9, H*W)."""
    HW = H * W
    row = np.arange(HW) // W
    col = np.arange(HW) % W
    masks = np.ones((9, HW), dtype=np.float32)
    for ky in range(3):
        for kx in range(3):
            t = ky * 3 + kx
            if ky == 0:
                masks[t] *= (row >= 1).astype(np.float32)
            if ky == 2:
                masks[t] *= (row <= H - 2).astype(np.float32)
            if kx == 0:
                masks[t] *= (col >= 1).astype(np.float32)
            if kx == 2:
                masks[t] *= (col <= W - 2).astype(np.float32)
    return masks


def _neuron_attention_kernel(x_ref, wm_ref, dwb_ref, pww_ref, pwb_ref, o_ref,
                             *, width):
    # x_ref:   (1, C, HW)  one batch element, channels on sublanes, H*W on lanes
    # wm_ref:  (9, C, HW)  depthwise 3x3 weights pre-multiplied by border masks
    # dwb_ref: (C, 1)      depthwise bias
    # pww_ref: (C, C)      pointwise weights, (C_out, C_in)
    # pwb_ref: (C, 1)      pointwise bias
    # o_ref:   (1, C, HW)  output
    C = x_ref.shape[1]
    HW = x_ref.shape[2]

    x = x_ref[0]                       # (C, HW) float32
    wm = wm_ref[...]                   # (9, C, HW)

    # Depthwise 3x3 conv, padding=1: out[p] = sum_taps x[p + s_tap] * w_masked_tap[p].
    # Center tap (ky=1, kx=1) needs no shift.
    acc = x * wm[4]
    for ky in range(3):
        for kx in range(3):
            if ky == 1 and kx == 1:
                continue
            t = ky * 3 + kx
            s = (ky - 1) * width + (kx - 1)
            # rolled[p] = x[(p + s) mod HW]; border wrap-around is killed by the
            # zeroed entries of the masked weight.
            shifted = pltpu.roll(x, shift=(-s) % HW, axis=1)
            acc = acc + shifted * wm[t]

    y = jnp.maximum(acc + dwb_ref[...], 0.0)               # bias + ReLU, (C, HW)

    # Pointwise 1x1 conv over channels.
    pww = pww_ref[...]                                     # (C_out, C_in)
    if C <= 32:
        # Tiny C: VPU broadcast-FMA accumulation (avoids a degenerate MXU matmul).
        y2 = pww[:, 0:1] * y[0:1, :]
        for ci in range(1, C):
            y2 = y2 + pww[:, ci:ci + 1] * y[ci:ci + 1, :]
    else:
        y2 = jnp.dot(pww, y, preferred_element_type=jnp.float32)
    y2 = y2 + pwb_ref[...]

    gate = jax.nn.sigmoid(y2)                              # (C, HW)
    o_ref[0] = x * gate                                    # residual gating


def neuron_attention_pallas(x_nchw, dw_w, dw_b, pw_w, pw_b):
    """x_nchw: (B, C, H, W) f32. dw_w: (C,1,3,3), dw_b: (C,), pw_w: (C,C,1,1), pw_b: (C,)."""
    B, C, H, W = x_nchw.shape
    HW = H * W

    # All reshapes below are contiguous (no transposes, no HBM shuffles).
    x_flat = x_nchw.reshape(B, C, HW).astype(jnp.float32)
    dww = dw_w.reshape(C, 9).astype(jnp.float32)            # tap = ky*3+kx
    dwb = dw_b.reshape(C, 1).astype(jnp.float32)
    pww = pw_w.reshape(C, C).astype(jnp.float32)             # (C_out, C_in)
    pwb = pw_b.reshape(C, 1).astype(jnp.float32)

    # Pre-combine depthwise weights with per-tap border masks: (9, C, HW).
    # Done once in the wrapper (tiny), so the kernel never holds captured constants.
    masks = jnp.asarray(_make_tap_masks(H, W))               # (9, HW)
    wmask = dww.T[:, :, None] * masks[:, None, :]             # (9, C, HW)

    kernel = functools.partial(_neuron_attention_kernel, width=W)

    out_flat = pl.pallas_call(
        kernel,
        out_shape=jax.ShapeDtypeStruct((B, C, HW), jnp.float32),
        grid_spec=pltpu.PrefetchScalarGridSpec(
            num_scalar_prefetch=0,
            grid=(B,),
            in_specs=[
                pl.BlockSpec((1, C, HW), lambda b: (b, 0, 0)),
                pl.BlockSpec((9, C, HW), lambda b: (0, 0, 0)),
                pl.BlockSpec((C, 1), lambda b: (0, 0)),
                pl.BlockSpec((C, C), lambda b: (0, 0)),
                pl.BlockSpec((C, 1), lambda b: (0, 0)),
            ],
            out_specs=pl.BlockSpec((1, C, HW), lambda b: (b, 0, 0)),
        ),
        compiler_params=pltpu.CompilerParams(
            dimension_semantics=("parallel",)),
    )(x_flat, wmask, dwb, pww, pwb)

    return out_flat.reshape(B, C, H, W)


def neuron_attention_ref(x_nchw, dw_w, dw_b, pw_w, pw_b):
    """Pure-JAX reference mirroring the PyTorch module."""
    C = x_nchw.shape[1]
    y = jax.lax.conv_general_dilated(
        x_nchw, dw_w, window_strides=(1, 1), padding=((1, 1), (1, 1)),
        dimension_numbers=("NCHW", "OIHW", "NCHW"), feature_group_count=C)
    y = y + dw_b[None, :, None, None]
    y = jnp.maximum(y, 0.0)
    y = jax.lax.conv_general_dilated(
        y, pw_w, window_strides=(1, 1), padding="VALID",
        dimension_numbers=("NCHW", "OIHW", "NCHW"))
    y = y + pw_b[None, :, None, None]
    y = jax.nn.sigmoid(y)
    return x_nchw * y


if __name__ == "__main__":
    B, C, H, W = 2, 4, 16, 16

    key = jax.random.PRNGKey(0)
    kx, k1, k2, k3, k4 = jax.random.split(key, 5)

    x = jax.random.normal(kx, (B, C, H, W), dtype=jnp.float32)

    # Deterministic parameter init (kaiming-uniform-ish bounds, like nn.Conv2d default).
    fan_dw = 1 * 3 * 3
    bound_dw = 1.0 / np.sqrt(fan_dw)
    dw_w = jax.random.uniform(k1, (C, 1, 3, 3), jnp.float32, -bound_dw, bound_dw)
    dw_b = jax.random.uniform(k2, (C,), jnp.float32, -bound_dw, bound_dw)

    fan_pw = C * 1 * 1
    bound_pw = 1.0 / np.sqrt(fan_pw)
    pw_w = jax.random.uniform(k3, (C, C, 1, 1), jnp.float32, -bound_pw, bound_pw)
    pw_b = jax.random.uniform(k4, (C,), jnp.float32, -bound_pw, bound_pw)

    out = neuron_attention_pallas(x, dw_w, dw_b, pw_w, pw_b)
    out = jax.block_until_ready(out)

    ref = jax.block_until_ready(neuron_attention_ref(x, dw_w, dw_b, pw_w, pw_b))
    np.testing.assert_allclose(np.asarray(out), np.asarray(ref), atol=1e-5, rtol=1e-5)

    print("KERNEL_OK")
</pallas_src>

<mosaic_0001>
module attributes {stable_mosaic.version = 11 : i64} {
  func.func @_neuron_attention_kernel(%arg0: i32, %arg1: memref<1x4x256xf32, #tpu.memory_space<vmem>>, %arg2: memref<9x4x256xf32, #tpu.memory_space<vmem>>, %arg3: memref<4x1xf32, #tpu.memory_space<vmem>>, %arg4: memref<4x4xf32, #tpu.memory_space<vmem>>, %arg5: memref<4x1xf32, #tpu.memory_space<vmem>>, %arg6: memref<1x4x256xf32, #tpu.memory_space<vmem>>) attributes {dimension_semantics = [#tpu.dimension_semantics<parallel>], iteration_bounds = array<i64: 2>, scalar_prefetch = 0 : i64, scratch_operands = 0 : i64, tpu.core_type = #tpu.core_type<tc>, window_params = [{transform_indices = @transform_0, window_bounds = array<i64: 1, 4, 256>}, {pipeline_mode = #tpu.pipeline_mode<synchronous>, transform_indices = @transform_1, window_bounds = array<i64: 9, 4, 256>}, {pipeline_mode = #tpu.pipeline_mode<synchronous>, transform_indices = @transform_2, window_bounds = array<i64: 4, 1>}, {pipeline_mode = #tpu.pipeline_mode<synchronous>, transform_indices = @transform_3, window_bounds = array<i64: 4, 4>}, {pipeline_mode = #tpu.pipeline_mode<synchronous>, transform_indices = @transform_4, window_bounds = array<i64: 4, 1>}, {transform_indices = @transform_5, window_bounds = array<i64: 1, 4, 256>}]} {
    %c0 = arith.constant 0 : index
    %c0_0 = arith.constant 0 : index
    %c0_1 = arith.constant 0 : index
    %0 = vector.load %arg1[%c0, %c0_0, %c0_1] : memref<1x4x256xf32, #tpu.memory_space<vmem>>, vector<1x4x256xf32>
    %1 = vector.shape_cast %0 : vector<1x4x256xf32> to vector<4x256xf32>
    %c0_2 = arith.constant 0 : index
    %c0_3 = arith.constant 0 : index
    %c0_4 = arith.constant 0 : index
    %2 = vector.load %arg2[%c0_2, %c0_3, %c0_4] : memref<9x4x256xf32, #tpu.memory_space<vmem>>, vector<9x4x256xf32>
    %3 = vector.extract_strided_slice %2 {offsets = [4, 0, 0], sizes = [1, 4, 256], strides = [1, 1, 1]} : vector<9x4x256xf32> to vector<1x4x256xf32>
    %4 = vector.shape_cast %3 : vector<1x4x256xf32> to vector<4x256xf32>
    %5 = arith.mulf %1, %4 : vector<4x256xf32>
    %c17_i32 = arith.constant 17 : i32
    %6 = tpu.dynamic_rotate %1 by %c17_i32 dim 1 : vector<4x256xf32>, i32 -> vector<4x256xf32>
    %7 = vector.extract_strided_slice %2 {offsets = [0, 0, 0], sizes = [1, 4, 256], strides = [1, 1, 1]} : vector<9x4x256xf32> to vector<1x4x256xf32>
    %8 = vector.shape_cast %7 : vector<1x4x256xf32> to vector<4x256xf32>
    %9 = arith.mulf %6, %8 : vector<4x256xf32>
    %10 = arith.addf %5, %9 : vector<4x256xf32>
    %c16_i32 = arith.constant 16 : i32
    %11 = tpu.dynamic_rotate %1 by %c16_i32 dim 1 : vector<4x256xf32>, i32 -> vector<4x256xf32>
    %12 = vector.extract_strided_slice %2 {offsets = [1, 0, 0], sizes = [1, 4, 256], strides = [1, 1, 1]} : vector<9x4x256xf32> to vector<1x4x256xf32>
    %13 = vector.shape_cast %12 : vector<1x4x256xf32> to vector<4x256xf32>
    %14 = arith.mulf %11, %13 : vector<4x256xf32>
    %15 = arith.addf %10, %14 : vector<4x256xf32>
    %c15_i32 = arith.constant 15 : i32
    %16 = tpu.dynamic_rotate %1 by %c15_i32 dim 1 : vector<4x256xf32>, i32 -> vector<4x256xf32>
    %17 = vector.extract_strided_slice %2 {offsets = [2, 0, 0], sizes = [1, 4, 256], strides = [1, 1, 1]} : vector<9x4x256xf32> to vector<1x4x256xf32>
    %18 = vector.shape_cast %17 : vector<1x4x256xf32> to vector<4x256xf32>
    %19 = arith.mulf %16, %18 : vector<4x256xf32>
    %20 = arith.addf %15, %19 : vector<4x256xf32>
    %c1_i32 = arith.constant 1 : i32
    %21 = tpu.dynamic_rotate %1 by %c1_i32 dim 1 : vector<4x256xf32>, i32 -> vector<4x256xf32>
    %22 = vector.extract_strided_slice %2 {offsets = [3, 0, 0], sizes = [1, 4, 256], strides = [1, 1, 1]} : vector<9x4x256xf32> to vector<1x4x256xf32>
    %23 = vector.shape_cast %22 : vector<1x4x256xf32> to vector<4x256xf32>
    %24 = arith.mulf %21, %23 : vector<4x256xf32>
    %25 = arith.addf %20, %24 : vector<4x256xf32>
    %c255_i32 = arith.constant 255 : i32
    %26 = tpu.dynamic_rotate %1 by %c255_i32 dim 1 : vector<4x256xf32>, i32 -> vector<4x256xf32>
    %27 = vector.extract_strided_slice %2 {offsets = [5, 0, 0], sizes = [1, 4, 256], strides = [1, 1, 1]} : vector<9x4x256xf32> to vector<1x4x256xf32>
    %28 = vector.shape_cast %27 : vector<1x4x256xf32> to vector<4x256xf32>
    %29 = arith.mulf %26, %28 : vector<4x256xf32>
    %30 = arith.addf %25, %29 : vector<4x256xf32>
    %c241_i32 = arith.constant 241 : i32
    %31 = tpu.dynamic_rotate %1 by %c241_i32 dim 1 : vector<4x256xf32>, i32 -> vector<4x256xf32>
    %32 = vector.extract_strided_slice %2 {offsets = [6, 0, 0], sizes = [1, 4, 256], strides = [1, 1, 1]} : vector<9x4x256xf32> to vector<1x4x256xf32>
    %33 = vector.shape_cast %32 : vector<1x4x256xf32> to vector<4x256xf32>
    %34 = arith.mulf %31, %33 : vector<4x256xf32>
    %35 = arith.addf %30, %34 : vector<4x256xf32>
    %c240_i32 = arith.constant 240 : i32
    %36 = tpu.dynamic_rotate %1 by %c240_i32 dim 1 : vector<4x256xf32>, i32 -> vector<4x256xf32>
    %37 = vector.extract_strided_slice %2 {offsets = [7, 0, 0], sizes = [1, 4, 256], strides = [1, 1, 1]} : vector<9x4x256xf32> to vector<1x4x256xf32>
    %38 = vector.shape_cast %37 : vector<1x4x256xf32> to vector<4x256xf32>
    %39 = arith.mulf %36, %38 : vector<4x256xf32>
    %40 = arith.addf %35, %39 : vector<4x256xf32>
    %c239_i32 = arith.constant 239 : i32
    %41 = tpu.dynamic_rotate %1 by %c239_i32 dim 1 : vector<4x256xf32>, i32 -> vector<4x256xf32>
    %42 = vector.extract_strided_slice %2 {offsets = [8, 0, 0], sizes = [1, 4, 256], strides = [1, 1, 1]} : vector<9x4x256xf32> to vector<1x4x256xf32>
    %43 = vector.shape_cast %42 : vector<1x4x256xf32> to vector<4x256xf32>
    %44 = arith.mulf %41, %43 : vector<4x256xf32>
    %45 = arith.addf %40, %44 : vector<4x256xf32>
    %c0_5 = arith.constant 0 : index
    %c0_6 = arith.constant 0 : index
    %46 = vector.load %arg3[%c0_5, %c0_6] : memref<4x1xf32, #tpu.memory_space<vmem>>, vector<4x1xf32>
    %47 = vector.broadcast %46 : vector<4x1xf32> to vector<4x256xf32>
    %48 = arith.addf %45, %47 : vector<4x256xf32>
    %cst = arith.constant 0.000000e+00 : f32
    %49 = vector.broadcast %cst : f32 to vector<4x256xf32>
    %50 = arith.maximumf %48, %49 : vector<4x256xf32>
    %c0_7 = arith.constant 0 : index
    %c0_8 = arith.constant 0 : index
    %51 = vector.load %arg4[%c0_7, %c0_8] : memref<4x4xf32, #tpu.memory_space<vmem>>, vector<4x4xf32>
    %52 = vector.extract_strided_slice %51 {offsets = [0, 0], sizes = [4, 1], strides = [1, 1]} : vector<4x4xf32> to vector<4x1xf32>
    %53 = vector.extract_strided_slice %50 {offsets = [0, 0], sizes = [1, 256], strides = [1, 1]} : vector<4x256xf32> to vector<1x256xf32>
    %54 = vector.broadcast %52 : vector<4x1xf32> to vector<4x256xf32>
    %55 = vector.broadcast %53 : vector<1x256xf32> to vector<4x256xf32>
    %56 = arith.mulf %54, %55 : vector<4x256xf32>
    %57 = vector.extract_strided_slice %51 {offsets = [0, 1], sizes = [4, 1], strides = [1, 1]} : vector<4x4xf32> to vector<4x1xf32>
    %58 = vector.extract_strided_slice %50 {offsets = [1, 0], sizes = [1, 256], strides = [1, 1]} : vector<4x256xf32> to vector<1x256xf32>
    %59 = vector.broadcast %57 : vector<4x1xf32> to vector<4x256xf32>
    %60 = vector.broadcast %58 : vector<1x256xf32> to vector<4x256xf32>
    %61 = arith.mulf %59, %60 : vector<4x256xf32>
    %62 = arith.addf %56, %61 : vector<4x256xf32>
    %63 = vector.extract_strided_slice %51 {offsets = [0, 2], sizes = [4, 1], strides = [1, 1]} : vector<4x4xf32> to vector<4x1xf32>
    %64 = vector.extract_strided_slice %50 {offsets = [2, 0], sizes = [1, 256], strides = [1, 1]} : vector<4x256xf32> to vector<1x256xf32>
    %65 = vector.broadcast %63 : vector<4x1xf32> to vector<4x256xf32>
    %66 = vector.broadcast %64 : vector<1x256xf32> to vector<4x256xf32>
    %67 = arith.mulf %65, %66 : vector<4x256xf32>
    %68 = arith.addf %62, %67 : vector<4x256xf32>
    %69 = vector.extract_strided_slice %51 {offsets = [0, 3], sizes = [4, 1], strides = [1, 1]} : vector<4x4xf32> to vector<4x1xf32>
    %70 = vector.extract_strided_slice %50 {offsets = [3, 0], sizes = [1, 256], strides = [1, 1]} : vector<4x256xf32> to vector<1x256xf32>
    %71 = vector.broadcast %69 : vector<4x1xf32> to vector<4x256xf32>
    %72 = vector.broadcast %70 : vector<1x256xf32> to vector<4x256xf32>
    %73 = arith.mulf %71, %72 : vector<4x256xf32>
    %74 = arith.addf %68, %73 : vector<4x256xf32>
    %c0_9 = arith.constant 0 : index
    %c0_10 = arith.constant 0 : index
    %75 = vector.load %arg5[%c0_9, %c0_10] : memref<4x1xf32, #tpu.memory_space<vmem>>, vector<4x1xf32>
    %76 = vector.broadcast %75 : vector<4x1xf32> to vector<4x256xf32>
    %77 = arith.addf %74, %76 : vector<4x256xf32>
    %78 = arith.negf %77 : vector<4x256xf32>
    %79 = math.exp %78 : vector<4x256xf32>
    %cst_11 = arith.constant 1.000000e+00 : f32
    %80 = vector.broadcast %cst_11 : f32 to vector<4x256xf32>
    %81 = arith.addf %80, %79 : vector<4x256xf32>
    %82 = arith.divf %80, %81 : vector<4x256xf32>
    %83 = arith.mulf %1, %82 : vector<4x256xf32>
    %c0_12 = arith.constant 0 : index
    %c0_13 = arith.constant 0 : index
    %c0_14 = arith.constant 0 : index
    %84 = vector.load %arg6[%c0_12, %c0_13, %c0_14] : memref<1x4x256xf32, #tpu.memory_space<vmem>>, vector<1x4x256xf32>
    %85 = vector.shape_cast %84 : vector<1x4x256xf32> to vector<4x256xf32>
    %86 = vector.shape_cast %83 : vector<4x256xf32> to vector<1x4x256xf32>
    tpu.vector_store %arg6[%c0_12, %c0_13, %c0_14], %86 {strides = array<i32>} : memref<1x4x256xf32, #tpu.memory_space<vmem>>, vector<1x4x256xf32>,
    return
  }
  func.func @transform_0(%arg0: i32) -> (i32, i32, i32) {
    %c0_i32 = arith.constant 0 : i32
    %c0_i32_0 = arith.constant 0 : i32
    %c0_i32_1 = arith.constant 0 : i32
    return %arg0, %c0_i32, %c0_i32_0 : i32, i32, i32
  }
  func.func @transform_1(%arg0: i32) -> (i32, i32, i32) {
    %c0_i32 = arith.constant 0 : i32
    %c0_i32_0 = arith.constant 0 : i32
    %c0_i32_1 = arith.constant 0 : i32
    %c0_i32_2 = arith.constant 0 : i32
    return %c0_i32, %c0_i32_0, %c0_i32_1 : i32, i32, i32
  }
  func.func @transform_2(%arg0: i32) -> (i32, i32) {
    %c0_i32 = arith.constant 0 : i32
    %c0_i32_0 = arith.constant 0 : i32
    %c0_i32_1 = arith.constant 0 : i32
    return %c0_i32, %c0_i32_0 : i32, i32
  }
  func.func @transform_3(%arg0: i32) -> (i32, i32) {
    %c0_i32 = arith.constant 0 : i32
    %c0_i32_0 = arith.constant 0 : i32
    %c0_i32_1 = arith.constant 0 : i32
    return %c0_i32, %c0_i32_0 : i32, i32
  }
  func.func @transform_4(%arg0: i32) -> (i32, i32) {
    %c0_i32 = arith.constant 0 : i32
    %c0_i32_0 = arith.constant 0 : i32
    %c0_i32_1 = arith.constant 0 : i32
    return %c0_i32, %c0_i32_0 : i32, i32
  }
  func.func @transform_5(%arg0: i32) -> (i32, i32, i32) {
    %c0_i32 = arith.constant 0 : i32
    %c0_i32_0 = arith.constant 0 : i32
    %c0_i32_1 = arith.constant 0 : i32
    return %arg0, %c0_i32, %c0_i32_0 : i32, i32, i32
  }
}

</mosaic_0001>

<llo_original>
// kernel: tpu_custom_call.1
$region0: #{tpu_custom_call.1}
  #allocation0 [shape = 'u32[]', space=smem, size = 0x4, offset = 0x4, fixed_abs, tag = 'smem constant byte address 0x4 - core index']
  #allocation1 [shape = 'u32[144,128]{1,0:T(1,128)}', space=vmem, size = 0x12000, scoped, tag = 'internal scratch']
  %s0 = inlined_call_operand.hbm [shape: f32[2,4,256], index: 0, kind: input, shape index: {}]
  %s1 = inlined_call_operand.hbm [shape: f32[9,4,256], index: 1, kind: input, shape index: {}]
  %s2 = inlined_call_operand.vmem [shape: f32[4,1], index: 2, kind: input, shape index: {}]
  %s3 = inlined_call_operand.vmem [shape: f32[4,4], index: 3, kind: input, shape index: {}]
  %s4 = inlined_call_operand.vmem [shape: f32[4,1], index: 4, kind: input, shape index: {}]
  %s5 = inlined_call_operand.hbm [shape: f32[2,4,256], index: 5, kind: output, shape index: {}]
  %s6 = sld [smem:[#allocation0]]
  $region61: #{tpu_custom_call.1} parent=0
    _
  %s8 = ssub.s32 1, %s6
  %s9 = scalar_select 0, %s8, %s6
  $region1: #{tpu_custom_call.1} parent=0
    #allocation2 [shape = 'u8[8192]{0}', space=vmem, size = 0x2000, scoped, tag = 'input window, operand 0']
    #allocation3 [shape = 's32[2]{0}', space=sflag, size = 0x8, scoped, tag = 'scoped memory for tpu_custom_call.1']
    #allocation4 [shape = 's32[2]{0}', space=sflag, size = 0x8, scoped, tag = 'scoped memory for tpu_custom_call.1']
    #allocation5 [shape = 'u8[36864]{0}', space=vmem, size = 0x9000, scoped, tag = 'input window, operand 1, single buffered']
    #allocation6 [shape = 's32[1]{0}', space=sflag, size = 0x4, scoped, tag = 'scoped memory for tpu_custom_call.1']
    #allocation7 [shape = 'u8[8192]{0}', space=vmem, size = 0x2000, scoped, tag = 'output window, operand 0']
    %10 = vsyncpa [#allocation3], 0
    %s11 = scalar_lea.sflag [#allocation3], 1
    %12 = vsyncpa %s11, 0
    %13 = vsyncpa [#allocation6], 0
    %14 = vsyncpa [#allocation4], 0
    %s15 = scalar_lea.sflag [#allocation4], 1
    %16 = vsyncpa %s15, 0
    loop: start=0, step=1, limit=4
    $region2: #{tpu_custom_call.1} parent=1 // loop_pre_header
      _
    $region3: #{tpu_custom_call.1} parent=1 // loop_header
      %s18 = sphi 0, %s22
      %p19 = scmp.ge.s32.totalorder %s18, 4
      %s28 = sphi 0, %s30
      %s31 = sphi 0, %s28
      %s32 = sphi 0, %s31
      %s48 = sphi 0, %s32
      %s52 = sphi 0, %s52
      %s54 = sphi 0, %s52
      %s55 = sphi 0, %s54
      %s69 = sphi 0, %s55
      %s73 = sphi 0, %s73
      %s75 = sphi 0, %s73
      %s76 = sphi 0, %s75
      %s90 = sphi 0, %s76
      %s94 = sphi 0, %s94
      %s96 = sphi 0, %s94
      %s97 = sphi 0, %s96
      %s111 = sphi 0, %s97
      %s115 = sphi 0, %s115
      %s117 = sphi 0, %s115
      %s118 = sphi 0, %s117
      %s132 = sphi 0, %s118
      %s138 = sphi 0, %s140
      %s141 = sphi 0, %s138
      %s142 = sphi 0, %s141
      %s158 = sphi 0, %s142
    $region4: #{tpu_custom_call.1} parent=1 // loop_header_branch
      %21 = sbr.rel (%p19) target = $region8
    $region5: #{tpu_custom_call.1} parent=1 // loop_body
      %s23 = ssub.s32 %s18, 1
      %s24 = ssub.s32 %s18, 2
      %s25 = sadd.s32 %s18, 1
      %s26 = ssub.s32 %s18, %s25
      %p27 = scmp.eq.s32.totalorder %s26, 0
      %s29 = sadd.s32 %s28, 1
      %s30 = scalar_select %p27, %s28, %s29
      %p33 = pneg %p27
      %p34 = scmp.eq.s32.totalorder %s18, 1
      %p35 = por %p33, %p34
      %p36 = scmp.ne.s32.totalorder %s28, %s31
      %p37 = scmp.eq.s32.totalorder %s18, 0
      %p38 = por %p36, %p37
      %p39 = scmp.ne.s32.totalorder %s28, %s31
      %p40 = scmp.eq.s32.totalorder %s23, 1
      %p41 = por %p39, %p40
      %p42 = scmp.ne.s32.totalorder %s31, %s32
      %p43 = scmp.eq.s32.totalorder %s23, 0
      %p44 = por %p42, %p43
      %p45 = scmp.ne.s32.totalorder %s31, %s32
      %p46 = scmp.eq.s32.totalorder %s24, 1
      %p47 = por %p45, %p46
      %p49 = scmp.ne.s32.totalorder %s32, %s48
      %p50 = scmp.eq.s32.totalorder %s24, 0
      %p51 = por %p49, %p50
      %s53 = sadd.s32 %s52, 1
      %p56 = scmp.eq.s32.totalorder %s18, 1
      %p57 = scmp.ne.s32.totalorder %s52, %s54
      %p58 = scmp.eq.s32.totalorder %s18, 0
      %p59 = por %p57, %p58
      %p60 = scmp.ne.s32.totalorder %s52, %s54
      %p61 = scmp.eq.s32.totalorder %s23, 1
      %p62 = por %p60, %p61
      %p63 = scmp.ne.s32.totalorder %s54, %s55
      %p64 = scmp.eq.s32.totalorder %s23, 0
      %p65 = por %p63, %p64
      %p66 = scmp.ne.s32.totalorder %s54, %s55
      %p67 = scmp.eq.s32.totalorder %s24, 1
      %p68 = por %p66, %p67
      %p70 = scmp.ne.s32.totalorder %s55, %s69
      %p71 = scmp.eq.s32.totalorder %s24, 0
      %p72 = por %p70, %p71
      %s74 = sadd.s32 %s73, 1
      %p77 = scmp.eq.s32.totalorder %s18, 1
      %p78 = scmp.ne.s32.totalorder %s73, %s75
      %p79 = scmp.eq.s32.totalorder %s18, 0
      %p80 = por %p78, %p79
      %p81 = scmp.ne.s32.totalorder %s73, %s75
      %p82 = scmp.eq.s32.totalorder %s23, 1
      %p83 = por %p81, %p82
      %p84 = scmp.ne.s32.totalorder %s75, %s76
      %p85 = scmp.eq.s32.totalorder %s23, 0
      %p86 = por %p84, %p85
      %p87 = scmp.ne.s32.totalorder %s75, %s76
      %p88 = scmp.eq.s32.totalorder %s24, 1
      %p89 = por %p87, %p88
      %p91 = scmp.ne.s32.totalorder %s76, %s90
      %p92 = scmp.eq.s32.totalorder %s24, 0
      %p93 = por %p91, %p92
      %s95 = sadd.s32 %s94, 1
      %p98 = scmp.eq.s32.totalorder %s18, 1
      %p99 = scmp.ne.s32.totalorder %s94, %s96
      %p100 = scmp.eq.s32.totalorder %s18, 0
      %p101 = por %p99, %p100
      %p102 = scmp.ne.s32.totalorder %s94, %s96
      %p103 = scmp.eq.s32.totalorder %s23, 1
      %p104 = por %p102, %p103
      %p105 = scmp.ne.s32.totalorder %s96, %s97
      %p106 = scmp.eq.s32.totalorder %s23, 0
      %p107 = por %p105, %p106
      %p108 = scmp.ne.s32.totalorder %s96, %s97
      %p109 = scmp.eq.s32.totalorder %s24, 1
      %p110 = por %p108, %p109
      %p112 = scmp.ne.s32.totalorder %s97, %s111
      %p113 = scmp.eq.s32.totalorder %s24, 0
      %p114 = por %p112, %p113
      %s116 = sadd.s32 %s115, 1
      %p119 = scmp.eq.s32.totalorder %s18, 1
      %p120 = scmp.ne.s32.totalorder %s115, %s117
      %p121 = scmp.eq.s32.totalorder %s18, 0
      %p122 = por %p120, %p121
      %p123 = scmp.ne.s32.totalorder %s115, %s117
      %p124 = scmp.eq.s32.totalorder %s23, 1
      %p125 = por %p123, %p124
      %p126 = scmp.ne.s32.totalorder %s117, %s118
      %p127 = scmp.eq.s32.totalorder %s23, 0
      %p128 = por %p126, %p127
      %p129 = scmp.ne.s32.totalorder %s117, %s118
      %p130 = scmp.eq.s32.totalorder %s24, 1
      %p131 = por %p129, %p130
      %p133 = scmp.ne.s32.totalorder %s118, %s132
      %p134 = scmp.eq.s32.totalorder %s24, 0
      %p135 = por %p133, %p134
      %s136 = ssub.s32 %s18, %s25
      %p137 = scmp.eq.s32.totalorder %s136, 0
      %s139 = sadd.s32 %s138, 1
      %s140 = scalar_select %p137, %s138, %s139
      %p143 = pneg %p137
      %p144 = scmp.eq.s32.totalorder %s18, 1
      %p145 = por %p143, %p144
      %p146 = scmp.ne.s32.totalorder %s138, %s141
      %p147 = scmp.eq.s32.totalorder %s18, 0
      %p148 = por %p146, %p147
      %p149 = scmp.ne.s32.totalorder %s138, %s141
      %p150 = scmp.eq.s32.totalorder %s23, 1
      %p151 = por %p149, %p150
      %p152 = scmp.ne.s32.totalorder %s141, %s142
      %p153 = scmp.eq.s32.totalorder %s23, 0
      %p154 = por %p152, %p153
      %p155 = scmp.ne.s32.totalorder %s141, %s142
      %p156 = scmp.eq.s32.totalorder %s24, 1
      %p157 = por %p155, %p156
      %p159 = scmp.ne.s32.totalorder %s142, %s158
      %p160 = scmp.eq.s32.totalorder %s24, 0
      %p161 = por %p159, %p160
      %p162 = scmp.le.s32.totalorder 1, %s18
      %p163 = scmp.lt.s32.totalorder %s18, 3
      %p164 = pnand %p162, %p163
      %p165 = pneg %p164
      // Predicated region
      $region9: #{tpu_custom_call.1} parent=5 // pred_check
        _
      $region10: #{tpu_custom_call.1} parent=5 // pred_check_branch
        %167 = sbr.rel (%p164) target = $region12
      $region11: #{tpu_custom_call.1} parent=5 // pred_region
        %s168 = ssub.s32 %s18, 1
        // Predicated region
        $region13: #{tpu_custom_call.1} parent=11 // pred_check
          %p169 = pneg %p65
        $region14: #{tpu_custom_call.1} parent=11 // pred_check_branch
          %171 = sbr.rel (%p169) target = $region16
        $region15: #{tpu_custom_call.1} parent=11 // pred_region
          %s173 = ssub.s32 1152, 1152
          %174 = vsyncadd [#allocation6], %s173
          %s175 = sshll.u32 [#allocation5], 4
          %s176 = int_to_ptr.vmem [resolvable:$true] %s175
          %181 = dma.hbm_to_vmem [thread:$0]  %s1, 1152, %s176, [#allocation6], 128, 128, 8
        $region16: #{tpu_custom_call.1} parent=11 // pred_fallthru
          _
        // Predicated region
        $region17: #{tpu_custom_call.1} parent=11 // pred_check
          %p182 = pneg %p86
        $region18: #{tpu_custom_call.1} parent=11 // pred_check_branch
          %184 = sbr.rel (%p182) target = $region20
        $region19: #{tpu_custom_call.1} parent=11 // pred_region
          _
        $region20: #{tpu_custom_call.1} parent=11 // pred_fallthru
          _
        // Predicated region
        $region21: #{tpu_custom_call.1} parent=11 // pred_check
          %p185 = pneg %p107
        $region22: #{tpu_custom_call.1} parent=11 // pred_check_branch
          %187 = sbr.rel (%p185) target = $region24
        $region23: #{tpu_custom_call.1} parent=11 // pred_region
          _
        $region24: #{tpu_custom_call.1} parent=11 // pred_fallthru
          _
        // Predicated region
        $region25: #{tpu_custom_call.1} parent=11 // pred_check
          %p188 = pneg %p128
        $region26: #{tpu_custom_call.1} parent=11 // pred_check_branch
          %190 = sbr.rel (%p188) target = $region28
        $region27: #{tpu_custom_call.1} parent=11 // pred_region
          _
        $region28: #{tpu_custom_call.1} parent=11 // pred_fallthru
          _
      $region12: #{tpu_custom_call.1} parent=5 // pred_fallthru
        _
      %p191 = scmp.lt.s32.totalorder %s18, 2
      // Predicated region
      $region29: #{tpu_custom_call.1} parent=5 // pred_check
        %p192 = pneg %p191
      $region30: #{tpu_custom_call.1} parent=5 // pred_check_branch
        %194 = sbr.rel (%p192) target = $region32
      $region31: #{tpu_custom_call.1} parent=5 // pred_region
        // Predicated region
        $region33: #{tpu_custom_call.1} parent=31 // pred_check
          %p195 = pneg %p38
        $region34: #{tpu_custom_call.1} parent=31 // pred_check_branch
          %197 = sbr.rel (%p195) target = $region36
        $region35: #{tpu_custom_call.1} parent=31 // pred_region
          %s198 = sand.u32 %s28, 1
          %s199 = scalar_lea.sflag [#allocation3], %s198
          %s200 = sand.u32 %s28, 1
          %s201 = smul.addr %s200, 8
          %s202 = scalar_lea.vmem [#allocation2], %s201
          %s204 = ssub.s32 128, 128
          %205 = vsyncadd %s199, %s204
          %s206 = smul.addr %s18, 2
          %s207 = smul.addr %s206, 64
          %s208 = scalar_lea.hbm %s0, %s207
          %s210 = sshll.u32 %s202, 4
          %s211 = int_to_ptr.vmem [resolvable:$true] %s210
          %213 = dma.hbm_to_vmem [thread:$0]  %s208, 128, %s211, %s199
        $region36: #{tpu_custom_call.1} parent=31 // pred_fallthru
          _
      $region32: #{tpu_custom_call.1} parent=5 // pred_fallthru
        _
      %p214 = scmp.le.s32.totalorder 1, %s18
      %p215 = scmp.lt.s32.totalorder %s18, 3
      %p216 = pnand %p214, %p215
      %p217 = pneg %p216
      // Predicated region
      $region37: #{tpu_custom_call.1} parent=5 // pred_check
        _
      $region38: #{tpu_custom_call.1} parent=5 // pred_check_branch
        %219 = sbr.rel (%p216) target = $region40
      $region39: #{tpu_custom_call.1} parent=5 // pred_region
        %s220 = ssub.s32 %s18, 1
        %s221 = sand.u32 %s31, 1
        %s222 = scalar_lea.sflag [#allocation3], %s221
        %s223 = sand.u32 %s31, 1
        %s224 = smul.addr %s223, 8
        %s225 = scalar_lea.vmem [#allocation2], %s224
        // Predicated region
        $region41: #{tpu_custom_call.1} parent=39 // pred_check
          %p226 = pneg %p44
        $region42: #{tpu_custom_call.1} parent=39 // pred_check_branch
          %228 = sbr.rel (%p226) target = $region44
        $region43: #{tpu_custom_call.1} parent=39 // pred_region
          %229 = dma.done %s222, 128
        $region44: #{tpu_custom_call.1} parent=39 // pred_fallthru
          _
        // Predicated region
        $region45: #{tpu_custom_call.1} parent=39 // pred_check
          %p230 = pneg %p65
        $region46: #{tpu_custom_call.1} parent=39 // pred_check_branch
          %232 = sbr.rel (%p230) target = $region48
        $region47: #{tpu_custom_call.1} parent=39 // pred_region
          %233 = dma.done [#allocation6], 1152
        $region48: #{tpu_custom_call.1} parent=39 // pred_fallthru
          _
        %s234 = sand.u32 %s31, 1
        %s235 = scalar_lea.sflag [#allocation3], %s234
        %s236 = sand.u32 %s31, 1
        %s237 = smul.addr %s236, 8
        %s238 = scalar_lea.vmem [#allocation2], %s237
        %p239 = pneg %p44
        %p240 = pneg %p41
        %p241 = pneg %p65
        %p242 = pneg %p62
        %p243 = pneg %p86
        %p244 = pneg %p83
        %p245 = pneg %p107
        %p246 = pneg %p104
        %p247 = pneg %p128
        %p248 = pneg %p125
        %p249 = pneg %p154
        %p250 = pneg %p151
        %s251 = sand.u32 %s141, 1
        %s252 = scalar_lea.sflag [#allocation4], %s251
        %s253 = sand.u32 %s141, 1
        %s254 = smul.addr %s253, 8
        %s255 = scalar_lea.vmem [#allocation7], %s254
        %v256 = vld [vmem:[%s225] sm:$0xff]
        %v257 = vld [vmem:[#allocation5] sm:$0xff]
        %v258 = vld [vmem:[#allocation5 + $0x8] sm:$0xff]
        %v259 = vld [vmem:[#allocation5 + $0x10] sm:$0xff]
        %v260 = vld [vmem:[#allocation5 + $0x18] sm:$0xff]
        %v261 = vld [vmem:[#allocation5 + $0x20] sm:$0xff]
        %v262 = vld [vmem:[#allocation5 + $0x28] sm:$0xff]
        %v263 = vld [vmem:[#allocation5 + $0x30] sm:$0xff]
        %v264 = vld [vmem:[#allocation5 + $0x38] sm:$0xff]
        %v265 = vld [vmem:[#allocation5 + $0x40] sm:$0xff]
        %v266 = vmul.f32 %v256, %v261
        %v268 = vcombine.high %v256, %v256
        %270 = vrot.lane.b32.xlu0 %v256, 17
        %v271 = vpop.permute.xlu0 %270
        %272 = vrot.lane.b32.xlu0 %v268, 17
        %v273 = vpop.permute.xlu0 %272
        %v274 = vlaneseq
        %v275 = vand.u32 %v274, 127
        %vm276 = vcmp.lt.s32.totalorder %v275, 17
        %v277 = vsel %vm276, %v271, %v273
        %v278 = vsel %vm276, %v273, %v271
        %v280 = vcombine.high %v257, %v257
        %v282 = vmul.f32 %v278, %v257
        %v283 = vmul.f32 %v277, %v280
        %v286 = vcombine.low %v282, %v283
        %v288 = vadd.f32 %v266, %v286
        %289 = vrot.lane.b32.xlu0 %v256, 16
        %v290 = vpop.permute.xlu0 %289
        %291 = vrot.lane.b32.xlu0 %v268, 16
        %v292 = vpop.permute.xlu0 %291
        %vm293 = vcmp.lt.s32.totalorder %v275, 16
        %v294 = vsel %vm293, %v290, %v292
        %v295 = vsel %vm293, %v292, %v290
        %v297 = vcombine.high %v258, %v258
        %v299 = vmul.f32 %v295, %v258
        %v300 = vmul.f32 %v294, %v297
        %v303 = vcombine.low %v299, %v300
        %v305 = vadd.f32 %v288, %v303
        %306 = vrot.lane.b32.xlu0 %v256, 15
        %v307 = vpop.permute.xlu0 %306
        %308 = vrot.lane.b32.xlu0 %v268, 15
        %v309 = vpop.permute.xlu0 %308
        %vm310 = vcmp.lt.s32.totalorder %v275, 15
        %v311 = vsel %vm310, %v307, %v309
        %v312 = vsel %vm310, %v309, %v307
        %v314 = vcombine.high %v259, %v259
        %v316 = vmul.f32 %v312, %v259
        %v317 = vmul.f32 %v311, %v314
        %v320 = vcombine.low %v316, %v317
        %v322 = vadd.f32 %v305, %v320
        %323 = vrot.lane.b32.xlu0 %v256, 1
        %v324 = vpop.permute.xlu0 %323
        %325 = vrot.lane.b32.xlu0 %v268, 1
        %v326 = vpop.permute.xlu0 %325
        %vm327 = vcmp.lt.s32.totalorder %v275, 1
        %v328 = vsel %vm327, %v324, %v326
        %v329 = vsel %vm327, %v326, %v324
        %v331 = vcombine.high %v260, %v260
        %v333 = vmul.f32 %v329, %v260
        %v334 = vmul.f32 %v328, %v331
        %v337 = vcombine.low %v333, %v334
        %v339 = vadd.f32 %v322, %v337
        %340 = vrot.lane.b32.xlu0 %v256, 127
        %v341 = vpop.permute.xlu0 %340
        %342 = vrot.lane.b32.xlu0 %v268, 127
        %v343 = vpop.permute.xlu0 %342
        %vm344 = vcmp.lt.s32.totalorder %v275, 127
        %v345 = vsel %vm344, %v341, %v343
        %v346 = vsel %vm344, %v343, %v341
        %v348 = vcombine.high %v262, %v262
        %v350 = vmul.f32 %v345, %v262
        %v351 = vmul.f32 %v346, %v348
        %v354 = vcombine.low %v350, %v351
        %v356 = vadd.f32 %v339, %v354
        %357 = vrot.lane.b32.xlu0 %v256, 113
        %v358 = vpop.permute.xlu0 %357
        %359 = vrot.lane.b32.xlu0 %v268, 113
        %v360 = vpop.permute.xlu0 %359
        %vm361 = vcmp.lt.s32.totalorder %v275, 113
        %v362 = vsel %vm361, %v358, %v360
        %v363 = vsel %vm361, %v360, %v358
        %v365 = vcombine.high %v263, %v263
        %v367 = vmul.f32 %v362, %v263
        %v368 = vmul.f32 %v363, %v365
        %v371 = vcombine.low %v367, %v368
        %v373 = vadd.f32 %v356, %v371
        %374 = vrot.lane.b32.xlu0 %v256, 112
        %v375 = vpop.permute.xlu0 %374
        %376 = vrot.lane.b32.xlu0 %v268, 112
        %v377 = vpop.permute.xlu0 %376
        %vm378 = vcmp.lt.s32.totalorder %v275, 112
        %v379 = vsel %vm378, %v375, %v377
        %v380 = vsel %vm378, %v377, %v375
        %v382 = vcombine.high %v264, %v264
        %v384 = vmul.f32 %v379, %v264
        %v385 = vmul.f32 %v380, %v382
        %v388 = vcombine.low %v384, %v385
        %v390 = vadd.f32 %v373, %v388
        %391 = vrot.lane.b32.xlu0 %v256, 111
        %v392 = vpop.permute.xlu0 %391
        %393 = vrot.lane.b32.xlu0 %v268, 111
        %v394 = vpop.permute.xlu0 %393
        %vm395 = vcmp.lt.s32.totalorder %v275, 111
        %v396 = vsel %vm395, %v392, %v394
        %v397 = vsel %vm395, %v394, %v392
        %v399 = vcombine.high %v265, %v265
        %v401 = vmul.f32 %v396, %v265
        %v402 = vmul.f32 %v397, %v399
        %v405 = vcombine.low %v401, %v402
        %v407 = vadd.f32 %v390, %v405
        %v408 = vld [vmem:[%s2] sm:$0xf]
        %410 = vset.pattern.permute.xlu0 0
        %411 = vperm.xlu0 %410, %v408
        %v412 = vpop.permute.xlu0 %411
        %v414 = vunpack.c.l.s4 839922192
        %v415 = vunpack.c.0.s8 %v414
        %v416 = vlaneseq
        %v417 = vshrl.u32 %v416, 7
        %v418 = vsub.s32 %v415, %v417
        %v419 = vrot.slane %v412, %v418
        %v421 = vadd.f32 %v407, %v419
        %v422 = vmax.f32 %v421, 0.0
        %v423 = vld [vmem:[%s3] sm:$0xf]
        %425 = vset.pattern.permute.xlu0 0
        %426 = vperm.xlu0 %425, %v423
        %v427 = vpop.permute.xlu0 %426
        %v430 = vlaneseq
        %v431 = vshrl.u32 %v430, 7
        %v432 = vsub.s32 0, %v431
        %v433 = vrot.slane %v422, %v432
        %v434 = vlaneseq
        %v435 = vshrl.u32 %v434, 7
        %v436 = vsub.s32 4, %v435
        %v437 = vrot.slane %v422, %v436
        %v440 = vlaneseq
        %v441 = vshrl.u32 %v440, 7
        %v442 = vsub.s32 0, %v441
        %v443 = vrot.slane %v433, %v442
        %v444 = vlaneseq
        %v445 = vshrl.u32 %v444, 7
        %v446 = vsub.s32 0, %v445
        %v447 = vrot.slane %v437, %v446
        %v448 = vmul.f32 %v427, %v443
        %v449 = vmul.f32 %v427, %v447
        %450 = vset.pattern.permute.xlu0 1
        %451 = vperm.xlu0 %450, %v423
        %v452 = vpop.permute.xlu0 %451
        %v454 = vlaneseq
        %v455 = vshrl.u32 %v454, 7
        %v456 = vsub.s32 1, %v455
        %v457 = vrot.slane %v422, %v456
        %v458 = vlaneseq
        %v459 = vshrl.u32 %v458, 7
        %v460 = vsub.s32 5, %v459
        %v461 = vrot.slane %v422, %v460
        %v464 = vlaneseq
        %v465 = vshrl.u32 %v464, 7
        %v466 = vsub.s32 1, %v465
        %v467 = vrot.slane %v457, %v466
        %v468 = vlaneseq
        %v469 = vshrl.u32 %v468, 7
        %v470 = vsub.s32 1, %v469
        %v471 = vrot.slane %v461, %v470
        %v472 = vmul.f32 %v452, %v467
        %v473 = vmul.f32 %v452, %v471
        %v474 = vadd.f32 %v448, %v472
        %v475 = vadd.f32 %v449, %v473
        %476 = vset.pattern.permute.xlu0 2
        %477 = vperm.xlu0 %476, %v423
        %v478 = vpop.permute.xlu0 %477
        %v480 = vlaneseq
        %v481 = vshrl.u32 %v480, 7
        %v482 = vsub.s32 2, %v481
        %v483 = vrot.slane %v422, %v482
        %v484 = vlaneseq
        %v485 = vshrl.u32 %v484, 7
        %v486 = vsub.s32 6, %v485
        %v487 = vrot.slane %v422, %v486
        %v490 = vlaneseq
        %v491 = vshrl.u32 %v490, 7
        %v492 = vsub.s32 2, %v491
        %v493 = vrot.slane %v483, %v492
        %v494 = vlaneseq
        %v495 = vshrl.u32 %v494, 7
        %v496 = vsub.s32 2, %v495
        %v497 = vrot.slane %v487, %v496
        %v498 = vmul.f32 %v478, %v493
        %v499 = vmul.f32 %v478, %v497
        %v500 = vadd.f32 %v474, %v498
        %v501 = vadd.f32 %v475, %v499
        %502 = vset.pattern.permute.xlu0 3
        %503 = vperm.xlu0 %502, %v423
        %v504 = vpop.permute.xlu0 %503
        %v506 = vlaneseq
        %v507 = vshrl.u32 %v506, 7
        %v508 = vsub.s32 3, %v507
        %v509 = vrot.slane %v422, %v508
        %v510 = vlaneseq
        %v511 = vshrl.u32 %v510, 7
        %v512 = vsub.s32 7, %v511
        %v513 = vrot.slane %v422, %v512
        %v516 = vlaneseq
        %v517 = vshrl.u32 %v516, 7
        %v518 = vsub.s32 3, %v517
        %v519 = vrot.slane %v509, %v518
        %v520 = vlaneseq
        %v521 = vshrl.u32 %v520, 7
        %v522 = vsub.s32 3, %v521
        %v523 = vrot.slane %v513, %v522
        %v524 = vmul.f32 %v504, %v519
        %v525 = vmul.f32 %v504, %v523
        %v526 = vadd.f32 %v500, %v524
        %v527 = vadd.f32 %v501, %v525
        %v528 = vld [vmem:[%s4] sm:$0xf]
        %530 = vset.pattern.permute.xlu0 0
        %531 = vperm.xlu0 %530, %v528
        %v532 = vpop.permute.xlu0 %531
        %v534 = vadd.f32 %v526, %v532
        %v535 = vadd.f32 %v527, %v532
        %v536 = vxor.u32 %v534, 2147483648
        %v537 = vxor.u32 %v535, 2147483648
        %v538 = vmul.f32 %v536, 1.442695
        %v539 = vpow.pop %v538
        %v540 = vmul.f32 %v537, 1.442695
        %v541 = vpow.pop %v540
        %v542 = vadd.f32 %v539, 1.0
        %v543 = vadd.f32 %v541, 1.0
        %v544 = vrcp.pop %v542
        %v545 = vmul.f32 1.0, %v544
        %v546 = vrcp.pop %v543
        %v547 = vmul.f32 1.0, %v546
        %v550 = vcombine.low %v545, %v547
        %v552 = vmul.f32 %v256, %v550
        %553 = vst [vmem:[%s255] sm:$0xff] %v552
        %s554 = sand.u32 %s141, 1
        %s555 = scalar_lea.sflag [#allocation4], %s554
        %s556 = sand.u32 %s141, 1
        %s557 = smul.addr %s556, 8
        %s558 = scalar_lea.vmem [#allocation7], %s557
        // Predicated region
        $region49: #{tpu_custom_call.1} parent=39 // pred_check
          %p559 = pneg %p151
        $region50: #{tpu_custom_call.1} parent=39 // pred_check_branch
          %561 = sbr.rel (%p559) target = $region52
        $region51: #{tpu_custom_call.1} parent=39 // pred_region
          %s563 = ssub.s32 128, 128
          %564 = vsyncadd %s555, %s563
          %s565 = smul.addr %s23, 2
          %s566 = smul.addr %s565, 64
          %s567 = scalar_lea.hbm %s5, %s566
          %s569 = sshll.u32 %s558, 4
          %s570 = int_to_ptr.vmem [resolvable:$true] %s569
          %572 = dma.vmem_to_hbm [thread:$0]  %s570, 128, %s567, %s555
        $region52: #{tpu_custom_call.1} parent=39 // pred_fallthru
          _
      $region40: #{tpu_custom_call.1} parent=5 // pred_fallthru
        _
      %p573 = scmp.le.s32.totalorder 2, %s18
      // Predicated region
      $region53: #{tpu_custom_call.1} parent=5 // pred_check
        %p574 = pneg %p573
      $region54: #{tpu_custom_call.1} parent=5 // pred_check_branch
        %576 = sbr.rel (%p574) target = $region56
      $region55: #{tpu_custom_call.1} parent=5 // pred_region
        %s577 = ssub.s32 %s18, 2
        // Predicated region
        $region57: #{tpu_custom_call.1} parent=55 // pred_check
          %p578 = pneg %p157
        $region58: #{tpu_custom_call.1} parent=55 // pred_check_branch
          %580 = sbr.rel (%p578) target = $region60
        $region59: #{tpu_custom_call.1} parent=55 // pred_region
          %s581 = sand.u32 %s142, 1
          %s582 = scalar_lea.sflag [#allocation4], %s581
          %s583 = sand.u32 %s142, 1
          %s584 = smul.addr %s583, 8
          %s585 = scalar_lea.vmem [#allocation7], %s584
          %586 = dma.done %s582, 128
        $region60: #{tpu_custom_call.1} parent=55 // pred_fallthru
          _
      $region56: #{tpu_custom_call.1} parent=5 // pred_fallthru
        _
    $region6: #{tpu_custom_call.1} parent=1 // loop_footer
      %s22 = sadd.s32 1, %s18
    $region7: #{tpu_custom_call.1} parent=1 // loop_footer_branch
      %17 = sbr.rel target = $region3
    $region8: #{tpu_custom_call.1} parent=1 // loop_exit
      _
    %587 = vsyncpa [#allocation3], 1
    %s588 = scalar_lea.sflag [#allocation3], 1
    %589 = vsyncpa %s588, 1
    %590 = vsyncpa [#allocation6], 1
    %591 = vsyncpa [#allocation4], 1
    %s592 = scalar_lea.sflag [#allocation4], 1
    %593 = vsyncpa %s592, 1

</llo_original>
